<compile_context>
chip_gen: v7x
topology: tpu7x:2x2x1
jax: 0.10.0
libtpu: 0.0.40
codegen_flags: <defaults>
</compile_context>

<pallas_src>
import jax
import jax.numpy as jnp
from jax.experimental import pallas as pl
from jax.experimental.pallas import tpu as pltpu


def _frozen_bn_kernel(scale_ref, offset_ref, x_ref, o_ref):
    # scale_ref / offset_ref: (R_pad, 1) f32, resident in VMEM (one block total).
    # x_ref / o_ref: (Rt, Lt) tile of the collapsed (R, L) activation.
    rt = x_ref.shape[0]
    start = pl.multiple_of(pl.program_id(0) * rt, rt)
    s = scale_ref[pl.ds(start, rt), :]      # (Rt, 1) f32
    b = offset_ref[pl.ds(start, rt), :]     # (Rt, 1) f32
    x = x_ref[...].astype(jnp.float32)
    o_ref[...] = (x * s + b).astype(o_ref.dtype)


def _round_up(a, b):
    return ((a + b - 1) // b) * b


def _round_down(a, b):
    return (a // b) * b


def frozen_batch_norm_2d(x, weight, bias, running_mean, running_var, *, eps=1e-5):
    """x: (N, C, H, W) like PyTorch; params: (C,). Returns (N, C, H, W)."""
    N, C, H, W = x.shape
    R = N * C
    L = H * W
    x2 = x.reshape(R, L)  # free reshape, no data movement

    # Fold per-channel affine once (tiny (C,)-sized ops, kept in f32).
    w = weight.astype(jnp.float32)
    b = bias.astype(jnp.float32)
    rm = running_mean.astype(jnp.float32)
    rv = running_var.astype(jnp.float32)
    scale = w * jax.lax.rsqrt(rv + eps)       # (C,)
    offset = b - rm * scale                   # (C,)

    itemsize = jnp.dtype(x.dtype).itemsize
    # Packed sublane count: 8 for f32, 16 for bf16/f16, 32 for int8/fp8.
    align = 8 * max(1, 4 // itemsize)

    # Per-generation VMEM budget (v7x has 64 MiB vs 128 MiB on v5e/v6e).
    try:
        vmem_cap = int(pltpu.get_tpu_info().vmem_capacity_bytes)
    except Exception:
        vmem_cap = 64 * 1024 * 1024
    # Target multi-MiB x tiles; double-buffered in+out ~= 4x tile bytes of VMEM.
    tile_budget = min(6 * 1024 * 1024, max(512 * 1024, vmem_cap // 10))

    # --- Tile selection (cdiv grid + masked edge blocks; no divisor hunting). ---
    if L * align * itemsize <= tile_budget:
        # Full spatial rows fit: lane-dense full-L tiles, pack as many rows as fit.
        Lt = L
        rt_cap = tile_budget // max(1, L * itemsize)
        Rt = max(align, _round_down(rt_cap, align))
        Rt = min(Rt, _round_up(R, align))
    else:
        # Split the lane axis into 128-multiples bounded by the budget (bounds the
        # ragged case too — never an unbounded Lt=L tile on v7x).
        Rt = align
        lt_cap = tile_budget // max(1, Rt * itemsize)
        Lt = max(128, _round_down(lt_cap, 128))
        Lt = min(Lt, _round_up(L, 128))

    # Ensure enough grid steps for megacore + double-buffer pipelining, but never
    # shrink tiles below ~1 MiB (past that the per-step overhead dominates).
    min_tile_bytes = 1 << 20

    def _steps(rt, lt):
        return pl.cdiv(R, rt) * pl.cdiv(L, lt)

    while _steps(Rt, Lt) < 8 and Rt * Lt * itemsize > min_tile_bytes:
        if Rt >= 2 * align:
            Rt = max(align, _round_down(Rt // 2, align))
        elif Lt >= 2 * 128:
            Lt = max(128, _round_down(Lt // 2, 128))
        else:
            break

    n_row_blocks = pl.cdiv(R, Rt)
    n_lane_blocks = pl.cdiv(L, Lt)
    grid = (n_row_blocks, n_lane_blocks)

    # Per-(N, C)-row params, padded so the in-kernel pl.ds slice is always in
    # bounds even for the masked edge row-block. Kept in float32.
    R_pad = n_row_blocks * Rt
    scale_rows = jnp.pad(jnp.tile(scale, N), (0, R_pad - R)).reshape(R_pad, 1)
    offset_rows = jnp.pad(jnp.tile(offset, N), (0, R_pad - R)).reshape(R_pad, 1)

    tile_bytes = Rt * Lt * itemsize
    vmem_limit = min(int(vmem_cap * 0.9),
                     max(16 * 1024 * 1024, 4 * tile_bytes + (2 << 20)))

    # Resident full-array param blocks (constant index_map -> DMA'd once).
    param_spec = pl.BlockSpec((R_pad, 1), lambda r, l: (0, 0))
    x_spec = pl.BlockSpec((Rt, Lt), lambda r, l: (r, l))

    # TODO(synk): if the caller can donate x, input_output_aliases={2: 0} would
    # reuse its HBM buffer; skipped here because the wrapper reshapes the input.
    out2 = pl.pallas_call(
        _frozen_bn_kernel,
        out_shape=jax.ShapeDtypeStruct((R, L), x.dtype),
        grid_spec=pltpu.PrefetchScalarGridSpec(
            num_scalar_prefetch=0,
            grid=grid,
            in_specs=[param_spec, param_spec, x_spec],
            out_specs=pl.BlockSpec((Rt, Lt), lambda r, l: (r, l)),
        ),
        compiler_params=pltpu.CompilerParams(
            dimension_semantics=("parallel", "parallel"),
            vmem_limit_bytes=vmem_limit,
        ),
    )(scale_rows, offset_rows, x2)

    return out2.reshape(N, C, H, W)


def _reference(x, w, b, rm, rv):
    eps = 1e-05
    scale = (w * jax.lax.rsqrt(rv + eps)).reshape(1, -1, 1, 1)
    bias = (b - rm * (w * jax.lax.rsqrt(rv + eps))).reshape(1, -1, 1, 1)
    return x * scale + bias


if __name__ == "__main__":
    key = jax.random.PRNGKey(0)
    k_x, k_w, k_b, k_m, k_v = jax.random.split(key, 5)

    N, C, H, W = 2, 4, 16, 16
    x = jax.random.normal(k_x, (N, C, H, W), dtype=jnp.float32)

    # FrozenBatchNorm2d buffers (ones/zeros at init), perturbed deterministically
    # so the test is non-trivial.
    weight = jnp.ones((C,), jnp.float32) + 0.1 * jax.random.normal(k_w, (C,))
    bias = jnp.zeros((C,), jnp.float32) + 0.1 * jax.random.normal(k_b, (C,))
    running_mean = jnp.zeros((C,), jnp.float32) + 0.1 * jax.random.normal(k_m, (C,))
    running_var = jnp.ones((C,), jnp.float32) + 0.1 * jnp.abs(jax.random.normal(k_v, (C,)))

    out = frozen_batch_norm_2d(x, weight, bias, running_mean, running_var)
    out = jax.block_until_ready(out)

    ref = _reference(x, weight, bias, running_mean, running_var)
    assert out.shape == (N, C, H, W)
    assert jnp.allclose(out, ref, atol=1e-5, rtol=1e-5), "mismatch vs reference"

    print("KERNEL_OK")
</pallas_src>

<mosaic_0001>
module attributes {stable_mosaic.version = 11 : i64} {
  func.func @_frozen_bn_kernel(%arg0: i32, %arg1: i32, %arg2: memref<8x1xf32, #tpu.memory_space<vmem>>, %arg3: memref<8x1xf32, #tpu.memory_space<vmem>>, %arg4: memref<8x256xf32, #tpu.memory_space<vmem>>, %arg5: memref<8x256xf32, #tpu.memory_space<vmem>>) attributes {dimension_semantics = [#tpu.dimension_semantics<parallel>, #tpu.dimension_semantics<parallel>], iteration_bounds = array<i64: 1, 1>, scalar_prefetch = 0 : i64, scratch_operands = 0 : i64, tpu.core_type = #tpu.core_type<tc>, window_params = [{pipeline_mode = #tpu.pipeline_mode<synchronous>, transform_indices = @transform_0, window_bounds = array<i64: 8, 1>}, {pipeline_mode = #tpu.pipeline_mode<synchronous>, transform_indices = @transform_1, window_bounds = array<i64: 8, 1>}, {transform_indices = @transform_2, window_bounds = array<i64: 8, 256>}, {transform_indices = @transform_3, window_bounds = array<i64: 8, 256>}]} {
    %c8_i32 = arith.constant 8 : i32
    %0 = arith.muli %arg0, %c8_i32 : i32
    %1 = tpu.assume_multiple %0, 8 : i32
    %2 = arith.index_cast %1 : i32 to index
    %c0 = arith.constant 0 : index
    %3 = vector.load %arg2[%2, %c0] : memref<8x1xf32, #tpu.memory_space<vmem>>, vector<8x1xf32>
    %4 = arith.index_cast %1 : i32 to index
    %c0_0 = arith.constant 0 : index
    %5 = vector.load %arg3[%4, %c0_0] : memref<8x1xf32, #tpu.memory_space<vmem>>, vector<8x1xf32>
    %c0_1 = arith.constant 0 : index
    %c0_2 = arith.constant 0 : index
    %6 = vector.load %arg4[%c0_1, %c0_2] : memref<8x256xf32, #tpu.memory_space<vmem>>, vector<8x256xf32>
    %7 = vector.broadcast %3 : vector<8x1xf32> to vector<8x256xf32>
    %8 = arith.mulf %6, %7 : vector<8x256xf32>
    %9 = vector.broadcast %5 : vector<8x1xf32> to vector<8x256xf32>
    %10 = arith.addf %8, %9 : vector<8x256xf32>
    %c0_3 = arith.constant 0 : index
    %c0_4 = arith.constant 0 : index
    %11 = vector.load %arg5[%c0_3, %c0_4] : memref<8x256xf32, #tpu.memory_space<vmem>>, vector<8x256xf32>
    tpu.vector_store %arg5[%c0_3, %c0_4], %10 {strides = array<i32>} : memref<8x256xf32, #tpu.memory_space<vmem>>, vector<8x256xf32>,
    return
  }
  func.func @transform_0(%arg0: i32, %arg1: i32) -> (i32, i32) {
    %c0_i32 = arith.constant 0 : i32
    %c0_i32_0 = arith.constant 0 : i32
    %c0_i32_1 = arith.constant 0 : i32
    return %c0_i32, %c0_i32_0 : i32, i32
  }
  func.func @transform_1(%arg0: i32, %arg1: i32) -> (i32, i32) {
    %c0_i32 = arith.constant 0 : i32
    %c0_i32_0 = arith.constant 0 : i32
    %c0_i32_1 = arith.constant 0 : i32
    return %c0_i32, %c0_i32_0 : i32, i32
  }
  func.func @transform_2(%arg0: i32, %arg1: i32) -> (i32, i32) {
    %c0_i32 = arith.constant 0 : i32
    return %arg0, %arg1 : i32, i32
  }
  func.func @transform_3(%arg0: i32, %arg1: i32) -> (i32, i32) {
    %c0_i32 = arith.constant 0 : i32
    return %arg0, %arg1 : i32, i32
  }
}

</mosaic_0001>

<llo_original>
// kernel: tpu_custom_call.1
$region0: #{tpu_custom_call.1}
  #allocation0 [shape = 'u32[]', space=smem, size = 0x4, offset = 0x4, fixed_abs, tag = 'smem constant byte address 0x4 - core index']
  #allocation1 [shape = 'u32[144,128]{1,0:T(1,128)}', space=vmem, size = 0x12000, scoped, tag = 'internal scratch']
  %s0 = inlined_call_operand.vmem [shape: f32[8,1], index: 0, kind: input, shape index: {}]
  %s1 = inlined_call_operand.vmem [shape: f32[8,1], index: 1, kind: input, shape index: {}]
  %s2 = inlined_call_operand.vmem [shape: f32[8,256], index: 2, kind: input, shape index: {}]
  %s3 = inlined_call_operand.hbm [shape: f32[8,256], index: 3, kind: output, shape index: {}]
  %s4 = sld [smem:[#allocation0]]
  $region22: #{tpu_custom_call.1} parent=0
    _
  %s6 = ssub.s32 1, %s4
  %s7 = scalar_select 0, %s6, %s4
  $region1: #{tpu_custom_call.1} parent=0
    #allocation2 [shape = 'u8[8192]{0}', space=vmem, size = 0x2000, scoped, tag = 'output window, operand 0, single buffered']
    #allocation3 [shape = 's32[1]{0}', space=sflag, size = 0x4, scoped, tag = 'scoped memory for tpu_custom_call.1']
    %8 = vsyncpa [#allocation3], 0
    // Predicated region
    $region2: #{tpu_custom_call.1} parent=1 // pred_check
      _
    $region3: #{tpu_custom_call.1} parent=1 // pred_check_branch
      %10 = sbr.rel (0) target = $region5
    $region4: #{tpu_custom_call.1} parent=1 // pred_region
      _
    $region5: #{tpu_custom_call.1} parent=1 // pred_fallthru
      _
    // Predicated region
    $region6: #{tpu_custom_call.1} parent=1 // pred_check
      _
    $region7: #{tpu_custom_call.1} parent=1 // pred_check_branch
      %12 = sbr.rel (0) target = $region9
    $region8: #{tpu_custom_call.1} parent=1 // pred_region
      _
    $region9: #{tpu_custom_call.1} parent=1 // pred_fallthru
      _
    // Predicated region
    $region10: #{tpu_custom_call.1} parent=1 // pred_check
      _
    $region11: #{tpu_custom_call.1} parent=1 // pred_check_branch
      %14 = sbr.rel (0) target = $region13
    $region12: #{tpu_custom_call.1} parent=1 // pred_region
      _
    $region13: #{tpu_custom_call.1} parent=1 // pred_fallthru
      _
    %s15 = smul.u32 0, 8
    %s16 = scalar_lea.vmem %s0, %s15
    %v17 = vld [vmem:[%s16] sm:$0xff]
    %s18 = scalar_lea.vmem %s1, %s15
    %v19 = vld [vmem:[%s18] sm:$0xff]
    %v20 = vld [vmem:[%s2] sm:$0xff]
    %v21 = vld [vmem:[%s2 + $0x8] sm:$0xff]
    %23 = vset.pattern.permute.xlu0 0
    %24 = vperm.xlu0 %23, %v17
    %v25 = vpop.permute.xlu0 %24
    %v27 = vmul.f32 %v20, %v25
    %v28 = vmul.f32 %v21, %v25
    %30 = vset.pattern.permute.xlu0 0
    %31 = vperm.xlu0 %30, %v19
    %v32 = vpop.permute.xlu0 %31
    %v34 = vadd.f32 %v27, %v32
    %v35 = vadd.f32 %v28, %v32
    %36 = vst [vmem:[#allocation2] sm:$0xff] %v34
    %37 = vst [vmem:[#allocation2 + $0x8] sm:$0xff] %v35
    // Predicated region
    $region14: #{tpu_custom_call.1} parent=1 // pred_check
      _
    $region15: #{tpu_custom_call.1} parent=1 // pred_check_branch
      %39 = sbr.rel (0) target = $region17
    $region16: #{tpu_custom_call.1} parent=1 // pred_region
      %s41 = ssub.s32 256, 256
      %42 = vsyncadd [#allocation3], %s41
      %s44 = sshll.u32 [#allocation2], 4
      %s45 = int_to_ptr.vmem [resolvable:$true] %s44
      %47 = dma.vmem_to_hbm [thread:$0]  %s45, 256, %s3, [#allocation3]
    $region17: #{tpu_custom_call.1} parent=1 // pred_fallthru
      _
    // Predicated region
    $region18: #{tpu_custom_call.1} parent=1 // pred_check
      _
    $region19: #{tpu_custom_call.1} parent=1 // pred_check_branch
      %49 = sbr.rel (0) target = $region21
    $region20: #{tpu_custom_call.1} parent=1 // pred_region
      %50 = dma.done [#allocation3], 256
    $region21: #{tpu_custom_call.1} parent=1 // pred_fallthru
      _
    %51 = vsyncpa [#allocation3], 1

</llo_original>
